<compile_context>
chip_gen: v6e
topology: v6e:2x2x1
jax: 0.10.0
libtpu: 0.0.40
codegen_flags: <defaults>
</compile_context>

<pallas_src>
import jax
import jax.numpy as jnp
from jax import lax
from jax.experimental import pallas as pl
from jax.experimental.pallas import tpu as pltpu


def _gconv_hyper_kernel(at_ref, x_ref, o_ref):
    # at_ref: (W, V)       A^T, constant index_map -> fetched once, resident in VMEM
    # x_ref : (tb, V, C)   batch tile of x in its natural layout (no wrapper transpose)
    # o_ref : (tb, W, C)   batch tile of the output in its natural layout
    at = at_ref[...]                     # compute dtype == at's dtype (f32 or bf16)
    tb = x_ref.shape[0]
    for b in range(tb):                  # static unroll: tb independent MXU matmuls
        xb = x_ref[b]                    # (V, C)
        if xb.dtype != at.dtype:
            xb = xb.astype(at.dtype)     # optional bf16 compute path (cast in VMEM)
        y = jnp.dot(at, xb, preferred_element_type=jnp.float32)   # (W, C), f32 acc
        o_ref[b] = y.astype(o_ref.dtype)


def _pick_batch_tile(n, v, w, c, itemsize, budget_bytes, max_tb=32):
    """Largest divisor of n (capped) whose double-buffered VMEM footprint fits the
    budget, preferring tilings that leave >=4 (else >=2) grid steps so the pipeline
    overlaps DMA/compute and v7x's two TensorCores both get work."""
    fixed = 2 * w * v * itemsize                 # A^T (conservatively double-buffered)
    per_b = 2 * (v * c + w * c) * itemsize       # x tile + out tile, double-buffered
    divisors = [d for d in range(min(n, max_tb), 0, -1) if n % d == 0]
    fitting = [d for d in divisors if fixed + d * per_b <= budget_bytes]
    if not fitting:
        return None
    for min_steps in (4, 2, 1):
        cands = [d for d in fitting if n // d >= min_steps]
        if cands:
            return cands[0]
    return fitting[-1]


def gconv_hyper(x, A, *, compute_dtype=None,
                min_flops_for_pallas=(1 << 17),
                vmem_budget_bytes=40 * 1024 * 1024,
                vmem_limit_bytes=48 * 1024 * 1024):
    """Pallas TPU implementation of torch.einsum('nvc,vw->nwc', x, A).contiguous()."""
    N, V, C = x.shape
    Va, W = A.shape
    assert Va == V, "A's first dim must match x's node dim"

    flops = 2 * N * V * W * C
    tb = _pick_batch_tile(N, V, W, C, jnp.dtype(x.dtype).itemsize, vmem_budget_bytes)
    if flops < min_flops_for_pallas or tb is None:
        # Escape hatch: problem too tiny for per-grid-step overhead, or A^T + a
        # single-batch tile cannot fit the VMEM budget.
        return jnp.einsum("nvc,vw->nwc", x, A)

    at = A.T                                      # (W, V): one tiny, one-off transpose
    if compute_dtype is not None and jnp.dtype(compute_dtype) != jnp.dtype(x.dtype):
        at = at.astype(compute_dtype)             # kernel casts x tiles to match

    return pl.pallas_call(
        _gconv_hyper_kernel,
        out_shape=jax.ShapeDtypeStruct((N, W, C), x.dtype),
        grid_spec=pltpu.PrefetchScalarGridSpec(
            num_scalar_prefetch=0,
            grid=(N // tb,),
            in_specs=[
                # Full-dim blocks on the last two axes always satisfy the (8, 128) rule.
                pl.BlockSpec((W, V), lambda i: (0, 0)),        # A^T, fetched once
                pl.BlockSpec((tb, V, C), lambda i: (i, 0, 0)),  # natural-layout x tile
            ],
            out_specs=pl.BlockSpec((tb, W, C), lambda i: (i, 0, 0)),
        ),
        compiler_params=pltpu.CompilerParams(
            dimension_semantics=("parallel",),      # batch axis -> v7x dual-TC sharding
            vmem_limit_bytes=vmem_limit_bytes,      # explicit: v5e default is 16 MiB
        ),
    )(at, x)


if __name__ == "__main__":
    # gconv_hyper defines no parameters; only runtime inputs x and A.
    key = jax.random.PRNGKey(0)
    kx, ka = jax.random.split(key)

    # Small DGCRN-like shapes: batch N=8, nodes V=W=32, channels C=32
    # (large enough that the Pallas path, not the einsum escape hatch, is used).
    N, V, W, C = 8, 32, 32, 32
    x = jax.random.normal(kx, (N, V, C), dtype=jnp.float32)
    A = jax.random.normal(ka, (V, W), dtype=jnp.float32)

    out = jax.block_until_ready(jax.jit(gconv_hyper)(x, A))

    # Reference at full f32 precision (matches the kernel's f32 MXU accumulation).
    ref = jnp.einsum("nvc,vw->nwc", x, A, precision=lax.Precision.HIGHEST)
    assert out.shape == (N, W, C)
    assert out.dtype == x.dtype
    assert jnp.allclose(out, ref, atol=1e-4, rtol=1e-4), float(jnp.max(jnp.abs(out - ref)))

    print("KERNEL_OK")
</pallas_src>

<mosaic_0001>
module attributes {stable_mosaic.version = 11 : i64} {
  func.func @_gconv_hyper_kernel(%arg0: i32, %arg1: memref<32x32xf32, #tpu.memory_space<vmem>>, %arg2: memref<2x32x32xf32, #tpu.memory_space<vmem>>, %arg3: memref<2x32x32xf32, #tpu.memory_space<vmem>>) attributes {dimension_semantics = [#tpu.dimension_semantics<parallel>], iteration_bounds = array<i64: 4>, scalar_prefetch = 0 : i64, scratch_operands = 0 : i64, tpu.core_type = #tpu.core_type<tc>, window_params = [{pipeline_mode = #tpu.pipeline_mode<synchronous>, transform_indices = @transform_0, window_bounds = array<i64: 32, 32>}, {transform_indices = @transform_1, window_bounds = array<i64: 2, 32, 32>}, {transform_indices = @transform_2, window_bounds = array<i64: 2, 32, 32>}]} {
    %c0 = arith.constant 0 : index
    %c0_0 = arith.constant 0 : index
    %0 = vector.load %arg1[%c0, %c0_0] : memref<32x32xf32, #tpu.memory_space<vmem>>, vector<32x32xf32>
    %c0_1 = arith.constant 0 : index
    %c0_2 = arith.constant 0 : index
    %c0_3 = arith.constant 0 : index
    %1 = vector.load %arg2[%c0_1, %c0_2, %c0_3] : memref<2x32x32xf32, #tpu.memory_space<vmem>>, vector<1x32x32xf32>
    %2 = vector.shape_cast %1 : vector<1x32x32xf32> to vector<32x32xf32>
    %cst = arith.constant dense<0.000000e+00> : vector<32x32xf32>
    %3 = tpu.matmul %0, %2, %cst {dimension_numbers = #tpu.dot_dimension_numbers<[1], [0], [0], [1], [0, 0, 1, 1], [], []>} : vector<32x32xf32>, vector<32x32xf32>, vector<32x32xf32> -> vector<32x32xf32>
    %c0_4 = arith.constant 0 : index
    %c0_5 = arith.constant 0 : index
    %c0_6 = arith.constant 0 : index
    %4 = vector.load %arg3[%c0_4, %c0_5, %c0_6] : memref<2x32x32xf32, #tpu.memory_space<vmem>>, vector<1x32x32xf32>
    %5 = vector.shape_cast %4 : vector<1x32x32xf32> to vector<32x32xf32>
    %6 = vector.shape_cast %3 : vector<32x32xf32> to vector<1x32x32xf32>
    tpu.vector_store %arg3[%c0_4, %c0_5, %c0_6], %6 {strides = array<i32>} : memref<2x32x32xf32, #tpu.memory_space<vmem>>, vector<1x32x32xf32>,
    %c1 = arith.constant 1 : index
    %c0_7 = arith.constant 0 : index
    %c0_8 = arith.constant 0 : index
    %7 = vector.load %arg2[%c1, %c0_7, %c0_8] : memref<2x32x32xf32, #tpu.memory_space<vmem>>, vector<1x32x32xf32>
    %8 = vector.shape_cast %7 : vector<1x32x32xf32> to vector<32x32xf32>
    %cst_9 = arith.constant dense<0.000000e+00> : vector<32x32xf32>
    %9 = tpu.matmul %0, %8, %cst_9 {dimension_numbers = #tpu.dot_dimension_numbers<[1], [0], [0], [1], [0, 0, 1, 1], [], []>} : vector<32x32xf32>, vector<32x32xf32>, vector<32x32xf32> -> vector<32x32xf32>
    %c1_10 = arith.constant 1 : index
    %c0_11 = arith.constant 0 : index
    %c0_12 = arith.constant 0 : index
    %10 = vector.load %arg3[%c1_10, %c0_11, %c0_12] : memref<2x32x32xf32, #tpu.memory_space<vmem>>, vector<1x32x32xf32>
    %11 = vector.shape_cast %10 : vector<1x32x32xf32> to vector<32x32xf32>
    %12 = vector.shape_cast %9 : vector<32x32xf32> to vector<1x32x32xf32>
    tpu.vector_store %arg3[%c1_10, %c0_11, %c0_12], %12 {strides = array<i32>} : memref<2x32x32xf32, #tpu.memory_space<vmem>>, vector<1x32x32xf32>,
    return
  }
  func.func @transform_0(%arg0: i32) -> (i32, i32) {
    %c0_i32 = arith.constant 0 : i32
    %c0_i32_0 = arith.constant 0 : i32
    %c0_i32_1 = arith.constant 0 : i32
    return %c0_i32, %c0_i32_0 : i32, i32
  }
  func.func @transform_1(%arg0: i32) -> (i32, i32, i32) {
    %c0_i32 = arith.constant 0 : i32
    %c0_i32_0 = arith.constant 0 : i32
    %c0_i32_1 = arith.constant 0 : i32
    return %arg0, %c0_i32, %c0_i32_0 : i32, i32, i32
  }
  func.func @transform_2(%arg0: i32) -> (i32, i32, i32) {
    %c0_i32 = arith.constant 0 : i32
    %c0_i32_0 = arith.constant 0 : i32
    %c0_i32_1 = arith.constant 0 : i32
    return %arg0, %c0_i32, %c0_i32_0 : i32, i32, i32
  }
}

</mosaic_0001>

<llo_original>
// kernel: gconv_hyper.1
$region0: #{gconv_hyper.1}
  #allocation0 [shape = 'u32[]', space=smem, size = 0x4, offset = 0x4, fixed_abs, tag = 'smem constant byte address 0x4 - core index']
  #allocation1 [shape = 'u32[144,128]{1,0:T(1,128)}', space=vmem, size = 0x12000, scoped, tag = 'internal scratch']
  %s0 = inlined_call_operand.vmem [shape: f32[32,32], index: 0, kind: input, shape index: {}]
  %s1 = inlined_call_operand.hbm [shape: f32[8,32,32], index: 1, kind: input, shape index: {}]
  %s2 = inlined_call_operand.hbm [shape: f32[8,32,32], index: 2, kind: output, shape index: {}]
  %s3 = sld [smem:[#allocation0]]
  $region45: #{gconv_hyper.1} parent=0
    _
  %s5 = ssub.s32 1, %s3
  %s6 = scalar_select 0, %s5, %s3
  $region1: #{gconv_hyper.1} parent=0
    #allocation2 [shape = 'u8[65536]{0}', space=vmem, size = 0x10000, scoped, tag = 'input window, operand 1']
    #allocation3 [shape = 's32[2]{0}', space=sflag, size = 0x8, scoped, tag = 'scoped memory for gconv_hyper.1']
    #allocation4 [shape = 's32[2]{0}', space=sflag, size = 0x8, scoped, tag = 'scoped memory for gconv_hyper.1']
    #allocation5 [shape = 'u8[65536]{0}', space=vmem, size = 0x10000, scoped, tag = 'output window, operand 0']
    %7 = vsyncpa [#allocation3], 0
    %s8 = scalar_lea.sflag [#allocation3], 1
    %9 = vsyncpa %s8, 0
    %10 = vsyncpa [#allocation4], 0
    %s11 = scalar_lea.sflag [#allocation4], 1
    %12 = vsyncpa %s11, 0
    loop: start=0, step=1, limit=6
    $region2: #{gconv_hyper.1} parent=1 // loop_pre_header
      _
    $region3: #{gconv_hyper.1} parent=1 // loop_header
      %s14 = sphi 0, %s18
      %p15 = scmp.ge.s32.totalorder %s14, 6
      %s22 = sphi 0, %s22
      %s24 = sphi 0, %s22
      %s25 = sphi 0, %s24
      %s39 = sphi 0, %s25
      %s45 = sphi 0, %s47
      %s48 = sphi 0, %s45
      %s49 = sphi 0, %s48
      %s65 = sphi 0, %s49
      %s71 = sphi 0, %s73
      %s74 = sphi 0, %s71
      %s75 = sphi 0, %s74
      %s91 = sphi 0, %s75
    $region4: #{gconv_hyper.1} parent=1 // loop_header_branch
      %17 = sbr.rel (%p15) target = $region8
    $region5: #{gconv_hyper.1} parent=1 // loop_body
      %s19 = ssub.s32 %s14, 1
      %s20 = ssub.s32 %s14, 2
      %s21 = sadd.s32 %s14, 1
      %s23 = sadd.s32 %s22, 1
      %p26 = scmp.eq.s32.totalorder %s14, 3
      %p27 = scmp.ne.s32.totalorder %s22, %s24
      %p28 = scmp.eq.s32.totalorder %s14, 0
      %p29 = por %p27, %p28
      %p30 = scmp.ne.s32.totalorder %s22, %s24
      %p31 = scmp.eq.s32.totalorder %s19, 3
      %p32 = por %p30, %p31
      %p33 = scmp.ne.s32.totalorder %s24, %s25
      %p34 = scmp.eq.s32.totalorder %s19, 0
      %p35 = por %p33, %p34
      %p36 = scmp.ne.s32.totalorder %s24, %s25
      %p37 = scmp.eq.s32.totalorder %s20, 3
      %p38 = por %p36, %p37
      %p40 = scmp.ne.s32.totalorder %s25, %s39
      %p41 = scmp.eq.s32.totalorder %s20, 0
      %p42 = por %p40, %p41
      %s43 = ssub.s32 %s14, %s21
      %p44 = scmp.eq.s32.totalorder %s43, 0
      %s46 = sadd.s32 %s45, 1
      %s47 = scalar_select %p44, %s45, %s46
      %p50 = pneg %p44
      %p51 = scmp.eq.s32.totalorder %s14, 3
      %p52 = por %p50, %p51
      %p53 = scmp.ne.s32.totalorder %s45, %s48
      %p54 = scmp.eq.s32.totalorder %s14, 0
      %p55 = por %p53, %p54
      %p56 = scmp.ne.s32.totalorder %s45, %s48
      %p57 = scmp.eq.s32.totalorder %s19, 3
      %p58 = por %p56, %p57
      %p59 = scmp.ne.s32.totalorder %s48, %s49
      %p60 = scmp.eq.s32.totalorder %s19, 0
      %p61 = por %p59, %p60
      %p62 = scmp.ne.s32.totalorder %s48, %s49
      %p63 = scmp.eq.s32.totalorder %s20, 3
      %p64 = por %p62, %p63
      %p66 = scmp.ne.s32.totalorder %s49, %s65
      %p67 = scmp.eq.s32.totalorder %s20, 0
      %p68 = por %p66, %p67
      %s69 = ssub.s32 %s14, %s21
      %p70 = scmp.eq.s32.totalorder %s69, 0
      %s72 = sadd.s32 %s71, 1
      %s73 = scalar_select %p70, %s71, %s72
      %p76 = pneg %p70
      %p77 = scmp.eq.s32.totalorder %s14, 3
      %p78 = por %p76, %p77
      %p79 = scmp.ne.s32.totalorder %s71, %s74
      %p80 = scmp.eq.s32.totalorder %s14, 0
      %p81 = por %p79, %p80
      %p82 = scmp.ne.s32.totalorder %s71, %s74
      %p83 = scmp.eq.s32.totalorder %s19, 3
      %p84 = por %p82, %p83
      %p85 = scmp.ne.s32.totalorder %s74, %s75
      %p86 = scmp.eq.s32.totalorder %s19, 0
      %p87 = por %p85, %p86
      %p88 = scmp.ne.s32.totalorder %s74, %s75
      %p89 = scmp.eq.s32.totalorder %s20, 3
      %p90 = por %p88, %p89
      %p92 = scmp.ne.s32.totalorder %s75, %s91
      %p93 = scmp.eq.s32.totalorder %s20, 0
      %p94 = por %p92, %p93
      %p95 = scmp.le.s32.totalorder 1, %s14
      %p96 = scmp.lt.s32.totalorder %s14, 5
      %p97 = pnand %p95, %p96
      %p98 = pneg %p97
      // Predicated region
      $region9: #{gconv_hyper.1} parent=5 // pred_check
        _
      $region10: #{gconv_hyper.1} parent=5 // pred_check_branch
        %100 = sbr.rel (%p97) target = $region12
      $region11: #{gconv_hyper.1} parent=5 // pred_region
        %s101 = ssub.s32 %s14, 1
        // Predicated region
        $region13: #{gconv_hyper.1} parent=11 // pred_check
          %p102 = pneg %p35
        $region14: #{gconv_hyper.1} parent=11 // pred_check_branch
          %104 = sbr.rel (%p102) target = $region16
        $region15: #{gconv_hyper.1} parent=11 // pred_region
          _
        $region16: #{gconv_hyper.1} parent=11 // pred_fallthru
          _
      $region12: #{gconv_hyper.1} parent=5 // pred_fallthru
        _
      %p105 = scmp.lt.s32.totalorder %s14, 4
      // Predicated region
      $region17: #{gconv_hyper.1} parent=5 // pred_check
        %p106 = pneg %p105
      $region18: #{gconv_hyper.1} parent=5 // pred_check_branch
        %108 = sbr.rel (%p106) target = $region20
      $region19: #{gconv_hyper.1} parent=5 // pred_region
        // Predicated region
        $region21: #{gconv_hyper.1} parent=19 // pred_check
          %p109 = pneg %p55
        $region22: #{gconv_hyper.1} parent=19 // pred_check_branch
          %111 = sbr.rel (%p109) target = $region24
        $region23: #{gconv_hyper.1} parent=19 // pred_region
          %s112 = sand.u32 %s45, 1
          %s113 = scalar_lea.sflag [#allocation3], %s112
          %s114 = sand.u32 %s45, 1
          %s115 = smul.addr %s114, 64
          %s116 = scalar_lea.vmem [#allocation2], %s115
          %s117 = smul.u32 2, %s14
          %s119 = ssub.s32 1024, 1024
          %120 = vsyncadd %s113, %s119
          %s121 = smul.addr %s117, 4
          %s122 = smul.addr %s121, 128
          %s123 = scalar_lea.hbm %s1, %s122
          %s124 = sshll.u32 %s116, 4
          %s125 = int_to_ptr.vmem [resolvable:$true] %s124
          %130 = dma.hbm_to_vmem [thread:$0]  %s123, 1024, %s125, %s113, 128, 128, 8
        $region24: #{gconv_hyper.1} parent=19 // pred_fallthru
          _
      $region20: #{gconv_hyper.1} parent=5 // pred_fallthru
        _
      %p131 = scmp.le.s32.totalorder 1, %s14
      %p132 = scmp.lt.s32.totalorder %s14, 5
      %p133 = pnand %p131, %p132
      %p134 = pneg %p133
      // Predicated region
      $region25: #{gconv_hyper.1} parent=5 // pred_check
        _
      $region26: #{gconv_hyper.1} parent=5 // pred_check_branch
        %136 = sbr.rel (%p133) target = $region28
      $region27: #{gconv_hyper.1} parent=5 // pred_region
        %s137 = ssub.s32 %s14, 1
        %s138 = sand.u32 %s48, 1
        %s139 = scalar_lea.sflag [#allocation3], %s138
        %s140 = sand.u32 %s48, 1
        %s141 = smul.addr %s140, 64
        %s142 = scalar_lea.vmem [#allocation2], %s141
        // Predicated region
        $region29: #{gconv_hyper.1} parent=27 // pred_check
          %p143 = pneg %p61
        $region30: #{gconv_hyper.1} parent=27 // pred_check_branch
          %145 = sbr.rel (%p143) target = $region32
        $region31: #{gconv_hyper.1} parent=27 // pred_region
          %146 = dma.done %s139, 1024
        $region32: #{gconv_hyper.1} parent=27 // pred_fallthru
          _
        %p147 = pneg %p35
        %p148 = pneg %p32
        %s149 = sand.u32 %s48, 1
        %s150 = scalar_lea.sflag [#allocation3], %s149
        %s151 = sand.u32 %s48, 1
        %s152 = smul.addr %s151, 64
        %s153 = scalar_lea.vmem [#allocation2], %s152
        %p154 = pneg %p61
        %p155 = pneg %p58
        %p156 = pneg %p87
        %p157 = pneg %p84
        %s158 = sand.u32 %s74, 1
        %s159 = scalar_lea.sflag [#allocation4], %s158
        %s160 = sand.u32 %s74, 1
        %s161 = smul.addr %s160, 64
        %s162 = scalar_lea.vmem [#allocation5], %s161
        %s163 = smul.u32 2, %s19
        %s164 = smul.u32 2, %s19
        %v165 = vld [vmem:[%s0] sm:$0xff]
        %v166 = vld [vmem:[%s0 + $0x8] sm:$0xff]
        %v167 = vld [vmem:[%s0 + $0x10] sm:$0xff]
        %v168 = vld [vmem:[%s0 + $0x18] sm:$0xff]
        %v169 = vld [vmem:[%s142] sm:$0xff]
        %v170 = vld [vmem:[%s142 + $0x8] sm:$0xff]
        %v171 = vld [vmem:[%s142 + $0x10] sm:$0xff]
        %v172 = vld [vmem:[%s142 + $0x18] sm:$0xff]
        %vm173 = vcmask 261120
        %v175 = vsel %vm173, %v165, 0
        %v178 = vsel %vm173, %v166, 0
        %v181 = vsel %vm173, %v167, 0
        %v184 = vsel %vm173, %v168, 0
        %186 = vmatprep.subr.mxu0 0.0
        %187 = vmatpush1.msra.mxu0 0.0
        %188 = vmatprep.subr.mxu0 0.0
        %189 = vmatpush1.msra.mxu0 0.0
        %190 = vmatprep.subr.mxu0 0.0
        %191 = vmatpush1.msra.mxu0 0.0
        %192 = vmatprep.subr.mxu0 0.0
        %193 = vmatpush1.msra.mxu0 0.0
        %194 = vmatprep.subr.mxu0 0.0
        %195 = vmatpush1.msra.mxu0 0.0
        %196 = vmatprep.subr.mxu0 0.0
        %197 = vmatpush1.msra.mxu0 0.0
        %198 = vmatprep.subr.mxu0 0.0
        %199 = vmatpush1.msra.mxu0 0.0
        %200 = vmatprep.subr.mxu0 0.0
        %201 = vmatpush1.msra.mxu0 0.0
        %202 = vmatprep.subr.mxu0 0.0
        %203 = vmatpush1.msra.mxu0 0.0
        %204 = vmatprep.subr.mxu0 0.0
        %205 = vmatpush1.msra.mxu0 0.0
        %206 = vmatprep.subr.mxu0 0.0
        %207 = vmatpush1.msra.mxu0 0.0
        %208 = vmatprep.subr.mxu0 0.0
        %209 = vmatpush1.msra.mxu0 0.0
        %210 = vmatprep.subr.mxu0 0.0
        %211 = vmatpush1.msra.mxu0 %v172
        %212 = vmatprep.subr.mxu0 0.0
        %213 = vmatpush1.msra.mxu0 %v171
        %214 = vmatprep.subr.mxu0 0.0
        %215 = vmatpush1.msra.mxu0 %v170
        %216 = vmatprep.subr.mxu0 0.0
        %217 = vmatpush1.msra.mxu0 %v169
        %218 = vmatprep.subr.mxu0 0.0
        %219 = vmatpush2.msra.mxu0 0.0
        %220 = vmatprep.subr.mxu0 0.0
        %221 = vmatpush2.msra.mxu0 0.0
        %222 = vmatprep.subr.mxu0 0.0
        %223 = vmatpush2.msra.mxu0 0.0
        %224 = vmatprep.subr.mxu0 0.0
        %225 = vmatpush2.msra.mxu0 0.0
        %226 = vmatprep.subr.mxu0 0.0
        %227 = vmatpush2.msra.mxu0 0.0
        %228 = vmatprep.subr.mxu0 0.0
        %229 = vmatpush2.msra.mxu0 0.0
        %230 = vmatprep.subr.mxu0 0.0
        %231 = vmatpush2.msra.mxu0 0.0
        %232 = vmatprep.subr.mxu0 0.0
        %233 = vmatpush2.msra.mxu0 0.0
        %234 = vmatprep.subr.mxu0 0.0
        %235 = vmatpush2.msra.mxu0 0.0
        %236 = vmatprep.subr.mxu0 0.0
        %237 = vmatpush2.msra.mxu0 0.0
        %238 = vmatprep.subr.mxu0 0.0
        %239 = vmatpush2.msra.mxu0 0.0
        %240 = vmatprep.subr.mxu0 0.0
        %241 = vmatpush2.msra.mxu0 0.0
        %242 = vmatprep.subr.mxu0 0.0
        %243 = vmatpush2.msra.mxu0 0.0
        %244 = vmatprep.subr.mxu0 0.0
        %245 = vmatpush2.msra.mxu0 0.0
        %246 = vmatprep.subr.mxu0 0.0
        %247 = vmatpush2.msra.mxu0 0.0
        %248 = vmatprep.subr.mxu0 0.0
        %249 = vmatpush2.msra.mxu0 0.0
        %250 = vmatprep.mubr.f32.mxu0 0.0
        %251 = vmatmul.mubr.f32.gmra.mxu0 %v175
        %v252 = vpop.f32.mrf.mxu0
        %v253 = vadd.f32 0.0, %v252
        %v254 = vpop.f32.mrf.mxu0
        %255 = vmatprep.mubr.f32.mxu0 0.0
        %256 = vmatmul.mubr.f32.gmra.mxu0 %v178
        %v257 = vpop.f32.mrf.mxu0
        %v258 = vadd.f32 0.0, %v257
        %v259 = vpop.f32.mrf.mxu0
        %260 = vmatprep.mubr.f32.mxu0 0.0
        %261 = vmatmul.mubr.f32.gmra.mxu0 %v181
        %v262 = vpop.f32.mrf.mxu0
        %v263 = vadd.f32 0.0, %v262
        %v264 = vpop.f32.mrf.mxu0
        %265 = vmatprep.mubr.f32.mxu0 0.0
        %266 = vmatmul.mubr.f32.gmra.mxu0 %v184
        %v267 = vpop.f32.mrf.mxu0
        %v268 = vadd.f32 0.0, %v267
        %v269 = vpop.f32.mrf.mxu0
        %270 = vdwg.mxu0
        %271 = vst.msk [vmem:[%s162] sm:$0xff] %vm173, %v253
        %272 = vst.msk [vmem:[%s162 + $0x8] sm:$0xff] %vm173, %v258
        %273 = vst.msk [vmem:[%s162 + $0x10] sm:$0xff] %vm173, %v263
        %274 = vst.msk [vmem:[%s162 + $0x18] sm:$0xff] %vm173, %v268
        %s275 = scalar_lea.vmem %s142, 32 [#allocation2]
        %v276 = vld [vmem:[%s275] sm:$0xff]
        %v277 = vld [vmem:[%s275 + $0x8] sm:$0xff]
        %v278 = vld [vmem:[%s275 + $0x10] sm:$0xff]
        %v279 = vld [vmem:[%s275 + $0x18] sm:$0xff]
        %280 = vmatprep.subr.mxu0 0.0
        %281 = vmatpush1.msra.mxu0 0.0
        %282 = vmatprep.subr.mxu0 0.0
        %283 = vmatpush1.msra.mxu0 0.0
        %284 = vmatprep.subr.mxu0 0.0
        %285 = vmatpush1.msra.mxu0 0.0
        %286 = vmatprep.subr.mxu0 0.0
        %287 = vmatpush1.msra.mxu0 0.0
        %288 = vmatprep.subr.mxu0 0.0
        %289 = vmatpush1.msra.mxu0 0.0
        %290 = vmatprep.subr.mxu0 0.0
        %291 = vmatpush1.msra.mxu0 0.0
        %292 = vmatprep.subr.mxu0 0.0
        %293 = vmatpush1.msra.mxu0 0.0
        %294 = vmatprep.subr.mxu0 0.0
        %295 = vmatpush1.msra.mxu0 0.0
        %296 = vmatprep.subr.mxu0 0.0
        %297 = vmatpush1.msra.mxu0 0.0
        %298 = vmatprep.subr.mxu0 0.0
        %299 = vmatpush1.msra.mxu0 0.0
        %300 = vmatprep.subr.mxu0 0.0
        %301 = vmatpush1.msra.mxu0 0.0
        %302 = vmatprep.subr.mxu0 0.0
        %303 = vmatpush1.msra.mxu0 0.0
        %304 = vmatprep.subr.mxu0 0.0
        %305 = vmatpush1.msra.mxu0 %v279
        %306 = vmatprep.subr.mxu0 0.0
        %307 = vmatpush1.msra.mxu0 %v278
        %308 = vmatprep.subr.mxu0 0.0
        %309 = vmatpush1.msra.mxu0 %v277
        %310 = vmatprep.subr.mxu0 0.0
        %311 = vmatpush1.msra.mxu0 %v276
        %312 = vmatprep.subr.mxu0 0.0
        %313 = vmatpush2.msra.mxu0 0.0
        %314 = vmatprep.subr.mxu0 0.0
        %315 = vmatpush2.msra.mxu0 0.0
        %316 = vmatprep.subr.mxu0 0.0
        %317 = vmatpush2.msra.mxu0 0.0
        %318 = vmatprep.subr.mxu0 0.0
        %319 = vmatpush2.msra.mxu0 0.0
        %320 = vmatprep.subr.mxu0 0.0
        %321 = vmatpush2.msra.mxu0 0.0
        %322 = vmatprep.subr.mxu0 0.0
        %323 = vmatpush2.msra.mxu0 0.0
        %324 = vmatprep.subr.mxu0 0.0
        %325 = vmatpush2.msra.mxu0 0.0
        %326 = vmatprep.subr.mxu0 0.0
        %327 = vmatpush2.msra.mxu0 0.0
        %328 = vmatprep.subr.mxu0 0.0
        %329 = vmatpush2.msra.mxu0 0.0
        %330 = vmatprep.subr.mxu0 0.0
        %331 = vmatpush2.msra.mxu0 0.0
        %332 = vmatprep.subr.mxu0 0.0
        %333 = vmatpush2.msra.mxu0 0.0
        %334 = vmatprep.subr.mxu0 0.0
        %335 = vmatpush2.msra.mxu0 0.0
        %336 = vmatprep.subr.mxu0 0.0
        %337 = vmatpush2.msra.mxu0 0.0
        %338 = vmatprep.subr.mxu0 0.0
        %339 = vmatpush2.msra.mxu0 0.0
        %340 = vmatprep.subr.mxu0 0.0
        %341 = vmatpush2.msra.mxu0 0.0
        %342 = vmatprep.subr.mxu0 0.0
        %343 = vmatpush2.msra.mxu0 0.0
        %344 = vmatprep.mubr.f32.mxu0 0.0
        %345 = vmatmul.mubr.f32.gmra.mxu0 %v175
        %v346 = vpop.f32.mrf.mxu0
        %v347 = vadd.f32 0.0, %v346
        %v348 = vpop.f32.mrf.mxu0
        %349 = vmatprep.mubr.f32.mxu0 0.0
        %350 = vmatmul.mubr.f32.gmra.mxu0 %v178
        %v351 = vpop.f32.mrf.mxu0
        %v352 = vadd.f32 0.0, %v351
        %v353 = vpop.f32.mrf.mxu0
        %354 = vmatprep.mubr.f32.mxu0 0.0
        %355 = vmatmul.mubr.f32.gmra.mxu0 %v181
        %v356 = vpop.f32.mrf.mxu0
        %v357 = vadd.f32 0.0, %v356
        %v358 = vpop.f32.mrf.mxu0
        %359 = vmatprep.mubr.f32.mxu0 0.0
        %360 = vmatmul.mubr.f32.gmra.mxu0 %v184
        %v361 = vpop.f32.mrf.mxu0
        %v362 = vadd.f32 0.0, %v361
        %v363 = vpop.f32.mrf.mxu0
        %364 = vdwg.mxu0
        %s365 = scalar_lea.vmem %s162, 32 [#allocation5]
        %366 = vst.msk [vmem:[%s365] sm:$0xff] %vm173, %v347
        %367 = vst.msk [vmem:[%s365 + $0x8] sm:$0xff] %vm173, %v352
        %368 = vst.msk [vmem:[%s365 + $0x10] sm:$0xff] %vm173, %v357
        %369 = vst.msk [vmem:[%s365 + $0x18] sm:$0xff] %vm173, %v362
        %s370 = sand.u32 %s74, 1
        %s371 = scalar_lea.sflag [#allocation4], %s370
        %s372 = sand.u32 %s74, 1
        %s373 = smul.addr %s372, 64
        %s374 = scalar_lea.vmem [#allocation5], %s373
        // Predicated region
        $region33: #{gconv_hyper.1} parent=27 // pred_check
          %p375 = pneg %p84
        $region34: #{gconv_hyper.1} parent=27 // pred_check_branch
          %377 = sbr.rel (%p375) target = $region36
        $region35: #{gconv_hyper.1} parent=27 // pred_region
          %s378 = smul.u32 2, %s19
          %s380 = ssub.s32 1024, 1024
          %381 = vsyncadd %s371, %s380
          %s382 = smul.addr %s378, 4
          %s383 = smul.addr %s382, 128
          %s384 = scalar_lea.hbm %s2, %s383
          %s385 = sshll.u32 %s374, 4
          %s386 = int_to_ptr.vmem [resolvable:$true] %s385
          %391 = dma.vmem_to_hbm [thread:$0]  %s386, 1024, %s384, %s371, 128, 128, 8
        $region36: #{gconv_hyper.1} parent=27 // pred_fallthru
          _
      $region28: #{gconv_hyper.1} parent=5 // pred_fallthru
        _
      %p392 = scmp.le.s32.totalorder 2, %s14
      // Predicated region
      $region37: #{gconv_hyper.1} parent=5 // pred_check
        %p393 = pneg %p392
      $region38: #{gconv_hyper.1} parent=5 // pred_check_branch
        %395 = sbr.rel (%p393) target = $region40
      $region39: #{gconv_hyper.1} parent=5 // pred_region
        %s396 = ssub.s32 %s14, 2
        // Predicated region
        $region41: #{gconv_hyper.1} parent=39 // pred_check
          %p397 = pneg %p90
        $region42: #{gconv_hyper.1} parent=39 // pred_check_branch
          %399 = sbr.rel (%p397) target = $region44
        $region43: #{gconv_hyper.1} parent=39 // pred_region
          %s400 = sand.u32 %s75, 1
          %s401 = scalar_lea.sflag [#allocation4], %s400
          %s402 = sand.u32 %s75, 1
          %s403 = smul.addr %s402, 64
          %s404 = scalar_lea.vmem [#allocation5], %s403
          %405 = dma.done %s401, 1024
        $region44: #{gconv_hyper.1} parent=39 // pred_fallthru
          _
      $region40: #{gconv_hyper.1} parent=5 // pred_fallthru
        _
    $region6: #{gconv_hyper.1} parent=1 // loop_footer
      %s18 = sadd.s32 1, %s14
    $region7: #{gconv_hyper.1} parent=1 // loop_footer_branch
      %13 = sbr.rel target = $region3
    $region8: #{gconv_hyper.1} parent=1 // loop_exit
      _
    %406 = vsyncpa [#allocation3], 1
    %s407 = scalar_lea.sflag [#allocation3], 1
    %408 = vsyncpa %s407, 1
    %409 = vsyncpa [#allocation4], 1
    %s410 = scalar_lea.sflag [#allocation4], 1
    %411 = vsyncpa %s410, 1

</llo_original>
